<compile_context>
chip_gen: v7x
topology: tpu7x:2x2x1
jax: 0.10.0
libtpu: 0.0.40
codegen_flags: <defaults>
</compile_context>

<pallas_src>
import jax
import jax.numpy as jnp
import numpy as np
from jax.experimental import pallas as pl
from jax.experimental.pallas import tpu as pltpu


# --------------------------------------------------------------------------
# Pallas kernel: TB batch samples per grid step.
# --------------------------------------------------------------------------
def channel_gate_kernel(x_ref,      # (TB, C, HW) VMEM block, input dtype
                        w1t_ref,    # (C, hid)  = W1.T of nn.Linear(C, hid)
                        b1_ref,     # (1, hid)
                        w2t_ref,    # (hid, C)  = W2.T of nn.Linear(hid, C)
                        b2_ref,     # (1, C)
                        o_ref):     # (TB, C, HW)
    x = x_ref[...]                                        # stay in input dtype
    inv_hw = 1.0 / x.shape[-1]

    # Global pooling over the spatial (lane) axis -> (TB, C).
    # Mean accumulates in f32; max stays in the input dtype, then promoted.
    p_avg = jnp.sum(x, axis=-1, dtype=jnp.float32) * inv_hw
    p_max = jnp.max(x, axis=-1).astype(jnp.float32)

    def mlp(p):                                           # p: (TB, C) f32
        h = jnp.dot(p, w1t_ref[...],
                    preferred_element_type=jnp.float32) + b1_ref[...]
        h = jnp.maximum(h, 0.0)                           # (TB, hid)
        return jnp.dot(h, w2t_ref[...],
                       preferred_element_type=jnp.float32) + b2_ref[...]

    att = mlp(p_avg) + mlp(p_max)                         # (TB, C) f32
    scale = jax.nn.sigmoid(att).astype(x.dtype)           # (TB, C)

    # Lane-broadcast multiply in the input dtype, lane-dense store.
    o_ref[...] = (x * scale[:, :, None]).astype(o_ref.dtype)


# --------------------------------------------------------------------------
# Batch-tile selection: ~2 MiB blocks, grid >= 2 when possible (megacore).
# --------------------------------------------------------------------------
def _pick_tb(n, bytes_per_sample, target_bytes=2 << 20):
    tb = max(1, min(n, target_bytes // max(bytes_per_sample, 1)))
    while tb > 1 and n % tb != 0:          # keep every block full
        tb -= 1
    if n >= 2 and pl.cdiv(n, tb) < 2:      # keep the parallel axis shardable
        tb = max(1, tb // 2)
        while tb > 1 and n % tb != 0:
            tb -= 1
    return tb


# --------------------------------------------------------------------------
# Wrapper: lane-dense reshape + gridded pallas_call.
# --------------------------------------------------------------------------
def channel_gate(x, params):
    N, C, H, W = x.shape
    HW = H * W
    hid = params['w1'].shape[0]

    x2 = x.reshape(N, C, HW)                 # free reshape: HW on the lane axis
    w1t = params['w1'].T                     # (C, hid)
    b1 = params['b1'].reshape(1, hid)
    w2t = params['w2'].T                     # (hid, C)
    b2 = params['b2'].reshape(1, C)

    TB = _pick_tb(N, C * HW * x.dtype.itemsize)
    grid = (N // TB,)

    const = lambda n: (0, 0)                 # weights: resident, fetched once
    out = pl.pallas_call(
        channel_gate_kernel,
        out_shape=jax.ShapeDtypeStruct((N, C, HW), x.dtype),
        grid=grid,
        in_specs=[
            pl.BlockSpec((TB, C, HW), lambda n: (n, 0, 0)),
            pl.BlockSpec((C, hid), const),
            pl.BlockSpec((1, hid), const),
            pl.BlockSpec((hid, C), const),
            pl.BlockSpec((1, C), const),
        ],
        out_specs=pl.BlockSpec((TB, C, HW), lambda n: (n, 0, 0)),
        compiler_params=pltpu.CompilerParams(
            dimension_semantics=("parallel",)),
    )(x2, w1t, b1, w2t, b2)
    return out.reshape(N, C, H, W)


# --------------------------------------------------------------------------
# Deterministic parameter init (mirrors nn.Linear(C, C//r), nn.Linear(C//r, C)).
# --------------------------------------------------------------------------
def init_params(key, gate_channels, reduction_ratio=16):
    hid = gate_channels // reduction_ratio
    k1, k2, k3, k4 = jax.random.split(key, 4)
    return {
        'w1': 0.5 * jax.random.normal(k1, (hid, gate_channels), jnp.float32),
        'b1': 0.1 * jax.random.normal(k2, (hid,), jnp.float32),
        'w2': 0.5 * jax.random.normal(k3, (gate_channels, hid), jnp.float32),
        'b2': 0.1 * jax.random.normal(k4, (gate_channels,), jnp.float32),
    }


# --------------------------------------------------------------------------
# Pure-JAX reference (mirrors the PyTorch forward), exact f32 contractions.
# --------------------------------------------------------------------------
def reference(x, p):
    def mlp(v):                              # v: (N, C)
        h = jnp.einsum('nc,hc->nh', v.astype(jnp.float32), p['w1'],
                       precision=jax.lax.Precision.HIGHEST) + p['b1']
        h = jnp.maximum(h, 0.0)
        return jnp.einsum('nh,ch->nc', h, p['w2'],
                          precision=jax.lax.Precision.HIGHEST) + p['b2']

    avg = jnp.mean(x.astype(jnp.float32), axis=(2, 3))
    mx = jnp.max(x, axis=(2, 3)).astype(jnp.float32)
    scale = jax.nn.sigmoid(mlp(avg) + mlp(mx)).astype(x.dtype)
    return x * scale[:, :, None, None]


if __name__ == "__main__":
    key = jax.random.PRNGKey(0)
    kx, kp = jax.random.split(key)

    # gate_channels=32 with the default reduction_ratio=16 -> hidden=2.
    N, C, H, W = 2, 32, 16, 16
    REDUCTION = 16

    x = jax.random.normal(kx, (N, C, H, W), dtype=jnp.float32)
    params = init_params(kp, C, REDUCTION)

    out = jax.block_until_ready(channel_gate(x, params))
    ref = jax.block_until_ready(reference(x, params))

    assert out.shape == x.shape and out.dtype == x.dtype
    np.testing.assert_allclose(np.asarray(out), np.asarray(ref),
                               rtol=1e-4, atol=1e-5)
    print("KERNEL_OK")
</pallas_src>

<mosaic_0001>
module attributes {stable_mosaic.version = 11 : i64} {
  func.func @channel_gate_kernel(%arg0: i32, %arg1: memref<1x32x256xf32, #tpu.memory_space<vmem>>, %arg2: memref<32x2xf32, #tpu.memory_space<vmem>>, %arg3: memref<1x2xf32, #tpu.memory_space<vmem>>, %arg4: memref<2x32xf32, #tpu.memory_space<vmem>>, %arg5: memref<1x32xf32, #tpu.memory_space<vmem>>, %arg6: memref<1x32x256xf32, #tpu.memory_space<vmem>>) attributes {dimension_semantics = [#tpu.dimension_semantics<parallel>], iteration_bounds = array<i64: 2>, scalar_prefetch = 0 : i64, scratch_operands = 0 : i64, tpu.core_type = #tpu.core_type<tc>, window_params = [{transform_indices = @transform_0, window_bounds = array<i64: 1, 32, 256>}, {pipeline_mode = #tpu.pipeline_mode<synchronous>, transform_indices = @transform_1, window_bounds = array<i64: 32, 2>}, {pipeline_mode = #tpu.pipeline_mode<synchronous>, transform_indices = @transform_2, window_bounds = array<i64: 1, 2>}, {pipeline_mode = #tpu.pipeline_mode<synchronous>, transform_indices = @transform_3, window_bounds = array<i64: 2, 32>}, {pipeline_mode = #tpu.pipeline_mode<synchronous>, transform_indices = @transform_4, window_bounds = array<i64: 1, 32>}, {transform_indices = @transform_5, window_bounds = array<i64: 1, 32, 256>}]} {
    %c0 = arith.constant 0 : index
    %c0_0 = arith.constant 0 : index
    %c0_1 = arith.constant 0 : index
    %0 = vector.load %arg1[%c0, %c0_0, %c0_1] : memref<1x32x256xf32, #tpu.memory_space<vmem>>, vector<1x32x256xf32>
    %cst = arith.constant dense<0.000000e+00> : vector<1x32xf32>
    %1 = vector.multi_reduction <add>, %0, %cst [2] : vector<1x32x256xf32> to vector<1x32xf32>
    %cst_2 = arith.constant 3.906250e-03 : f32
    %2 = vector.broadcast %cst_2 : f32 to vector<1x32xf32>
    %3 = arith.mulf %1, %2 : vector<1x32xf32>
    %cst_3 = arith.constant dense<0xFF800000> : vector<1x32xf32>
    %4 = vector.multi_reduction <maximumf>, %0, %cst_3 [2] : vector<1x32x256xf32> to vector<1x32xf32>
    %c0_4 = arith.constant 0 : index
    %c0_5 = arith.constant 0 : index
    %5 = vector.load %arg2[%c0_4, %c0_5] : memref<32x2xf32, #tpu.memory_space<vmem>>, vector<32x2xf32>
    %cst_6 = arith.constant dense<0.000000e+00> : vector<1x2xf32>
    %6 = tpu.matmul %3, %5, %cst_6 {dimension_numbers = #tpu.dot_dimension_numbers<[1], [0], [0], [1], [0, 0, 1, 1], [], []>} : vector<1x32xf32>, vector<32x2xf32>, vector<1x2xf32> -> vector<1x2xf32>
    %c0_7 = arith.constant 0 : index
    %c0_8 = arith.constant 0 : index
    %7 = vector.load %arg3[%c0_7, %c0_8] : memref<1x2xf32, #tpu.memory_space<vmem>>, vector<1x2xf32>
    %8 = arith.addf %6, %7 : vector<1x2xf32>
    %cst_9 = arith.constant 0.000000e+00 : f32
    %9 = vector.broadcast %cst_9 : f32 to vector<1x2xf32>
    %10 = arith.maximumf %8, %9 : vector<1x2xf32>
    %c0_10 = arith.constant 0 : index
    %c0_11 = arith.constant 0 : index
    %11 = vector.load %arg4[%c0_10, %c0_11] : memref<2x32xf32, #tpu.memory_space<vmem>>, vector<2x32xf32>
    %cst_12 = arith.constant dense<0.000000e+00> : vector<1x32xf32>
    %12 = tpu.matmul %10, %11, %cst_12 {dimension_numbers = #tpu.dot_dimension_numbers<[1], [0], [0], [1], [0, 0, 1, 1], [], []>} : vector<1x2xf32>, vector<2x32xf32>, vector<1x32xf32> -> vector<1x32xf32>
    %c0_13 = arith.constant 0 : index
    %c0_14 = arith.constant 0 : index
    %13 = vector.load %arg5[%c0_13, %c0_14] : memref<1x32xf32, #tpu.memory_space<vmem>>, vector<1x32xf32>
    %14 = arith.addf %12, %13 : vector<1x32xf32>
    %c0_15 = arith.constant 0 : index
    %c0_16 = arith.constant 0 : index
    %15 = vector.load %arg2[%c0_15, %c0_16] : memref<32x2xf32, #tpu.memory_space<vmem>>, vector<32x2xf32>
    %cst_17 = arith.constant dense<0.000000e+00> : vector<1x2xf32>
    %16 = tpu.matmul %4, %15, %cst_17 {dimension_numbers = #tpu.dot_dimension_numbers<[1], [0], [0], [1], [0, 0, 1, 1], [], []>} : vector<1x32xf32>, vector<32x2xf32>, vector<1x2xf32> -> vector<1x2xf32>
    %c0_18 = arith.constant 0 : index
    %c0_19 = arith.constant 0 : index
    %17 = vector.load %arg3[%c0_18, %c0_19] : memref<1x2xf32, #tpu.memory_space<vmem>>, vector<1x2xf32>
    %18 = arith.addf %16, %17 : vector<1x2xf32>
    %cst_20 = arith.constant 0.000000e+00 : f32
    %19 = vector.broadcast %cst_20 : f32 to vector<1x2xf32>
    %20 = arith.maximumf %18, %19 : vector<1x2xf32>
    %c0_21 = arith.constant 0 : index
    %c0_22 = arith.constant 0 : index
    %21 = vector.load %arg4[%c0_21, %c0_22] : memref<2x32xf32, #tpu.memory_space<vmem>>, vector<2x32xf32>
    %cst_23 = arith.constant dense<0.000000e+00> : vector<1x32xf32>
    %22 = tpu.matmul %20, %21, %cst_23 {dimension_numbers = #tpu.dot_dimension_numbers<[1], [0], [0], [1], [0, 0, 1, 1], [], []>} : vector<1x2xf32>, vector<2x32xf32>, vector<1x32xf32> -> vector<1x32xf32>
    %c0_24 = arith.constant 0 : index
    %c0_25 = arith.constant 0 : index
    %23 = vector.load %arg5[%c0_24, %c0_25] : memref<1x32xf32, #tpu.memory_space<vmem>>, vector<1x32xf32>
    %24 = arith.addf %22, %23 : vector<1x32xf32>
    %25 = arith.addf %14, %24 : vector<1x32xf32>
    %26 = arith.negf %25 : vector<1x32xf32>
    %27 = math.exp %26 : vector<1x32xf32>
    %cst_26 = arith.constant 1.000000e+00 : f32
    %28 = vector.broadcast %cst_26 : f32 to vector<1x32xf32>
    %29 = arith.addf %28, %27 : vector<1x32xf32>
    %30 = arith.divf %28, %29 : vector<1x32xf32>
    %31 = vector.shape_cast %30 : vector<1x32xf32> to vector<1x32x1xf32>
    %32 = vector.broadcast %31 : vector<1x32x1xf32> to vector<1x32x256xf32>
    %33 = arith.mulf %0, %32 : vector<1x32x256xf32>
    %c0_27 = arith.constant 0 : index
    %c0_28 = arith.constant 0 : index
    %c0_29 = arith.constant 0 : index
    %34 = vector.load %arg6[%c0_27, %c0_28, %c0_29] : memref<1x32x256xf32, #tpu.memory_space<vmem>>, vector<1x32x256xf32>
    tpu.vector_store %arg6[%c0_27, %c0_28, %c0_29], %33 {strides = array<i32>} : memref<1x32x256xf32, #tpu.memory_space<vmem>>, vector<1x32x256xf32>,
    return
  }
  func.func @transform_0(%arg0: i32) -> (i32, i32, i32) {
    %c0_i32 = arith.constant 0 : i32
    %c0_i32_0 = arith.constant 0 : i32
    %c0_i32_1 = arith.constant 0 : i32
    return %arg0, %c0_i32, %c0_i32_0 : i32, i32, i32
  }
  func.func @transform_1(%arg0: i32) -> (i32, i32) {
    %c0_i32 = arith.constant 0 : i32
    %c0_i32_0 = arith.constant 0 : i32
    %c0_i32_1 = arith.constant 0 : i32
    return %c0_i32, %c0_i32_0 : i32, i32
  }
  func.func @transform_2(%arg0: i32) -> (i32, i32) {
    %c0_i32 = arith.constant 0 : i32
    %c0_i32_0 = arith.constant 0 : i32
    %c0_i32_1 = arith.constant 0 : i32
    return %c0_i32, %c0_i32_0 : i32, i32
  }
  func.func @transform_3(%arg0: i32) -> (i32, i32) {
    %c0_i32 = arith.constant 0 : i32
    %c0_i32_0 = arith.constant 0 : i32
    %c0_i32_1 = arith.constant 0 : i32
    return %c0_i32, %c0_i32_0 : i32, i32
  }
  func.func @transform_4(%arg0: i32) -> (i32, i32) {
    %c0_i32 = arith.constant 0 : i32
    %c0_i32_0 = arith.constant 0 : i32
    %c0_i32_1 = arith.constant 0 : i32
    return %c0_i32, %c0_i32_0 : i32, i32
  }
  func.func @transform_5(%arg0: i32) -> (i32, i32, i32) {
    %c0_i32 = arith.constant 0 : i32
    %c0_i32_0 = arith.constant 0 : i32
    %c0_i32_1 = arith.constant 0 : i32
    return %arg0, %c0_i32, %c0_i32_0 : i32, i32, i32
  }
}

</mosaic_0001>

<llo_original>
// kernel: tpu_custom_call.1
$region0: #{tpu_custom_call.1}
  #allocation0 [shape = 'u32[]', space=smem, size = 0x4, offset = 0x4, fixed_abs, tag = 'smem constant byte address 0x4 - core index']
  #allocation1 [shape = 'u32[144,128]{1,0:T(1,128)}', space=vmem, size = 0x12000, scoped, tag = 'internal scratch']
  %s0 = inlined_call_operand.hbm [shape: f32[2,32,256], index: 0, kind: input, shape index: {}]
  %s1 = inlined_call_operand.vmem [shape: f32[32,2], index: 1, kind: input, shape index: {}]
  %s2 = inlined_call_operand.vmem [shape: f32[1,2], index: 2, kind: input, shape index: {}]
  %s3 = inlined_call_operand.vmem [shape: f32[2,32], index: 3, kind: input, shape index: {}]
  %s4 = inlined_call_operand.vmem [shape: f32[1,32], index: 4, kind: input, shape index: {}]
  %s5 = inlined_call_operand.hbm [shape: f32[2,32,256], index: 5, kind: output, shape index: {}]
  %s6 = sld [smem:[#allocation0]]
  $region57: #{tpu_custom_call.1} parent=0
    _
  %s8 = ssub.s32 1, %s6
  %s9 = scalar_select 0, %s8, %s6
  $region1: #{tpu_custom_call.1} parent=0
    #allocation2 [shape = 'u8[65536]{0}', space=vmem, size = 0x10000, scoped, tag = 'input window, operand 0']
    #allocation3 [shape = 's32[2]{0}', space=sflag, size = 0x8, scoped, tag = 'scoped memory for tpu_custom_call.1']
    #allocation4 [shape = 's32[2]{0}', space=sflag, size = 0x8, scoped, tag = 'scoped memory for tpu_custom_call.1']
    #allocation5 [shape = 'u8[65536]{0}', space=vmem, size = 0x10000, scoped, tag = 'output window, operand 0']
    %10 = vsyncpa [#allocation3], 0
    %s11 = scalar_lea.sflag [#allocation3], 1
    %12 = vsyncpa %s11, 0
    %13 = vsyncpa [#allocation4], 0
    %s14 = scalar_lea.sflag [#allocation4], 1
    %15 = vsyncpa %s14, 0
    loop: start=0, step=1, limit=4
    $region2: #{tpu_custom_call.1} parent=1 // loop_pre_header
      _
    $region3: #{tpu_custom_call.1} parent=1 // loop_header
      %s17 = sphi 0, %s21
      %p18 = scmp.ge.s32.totalorder %s17, 4
      %s27 = sphi 0, %s29
      %s30 = sphi 0, %s27
      %s31 = sphi 0, %s30
      %s47 = sphi 0, %s31
      %s51 = sphi 0, %s51
      %s53 = sphi 0, %s51
      %s54 = sphi 0, %s53
      %s68 = sphi 0, %s54
      %s72 = sphi 0, %s72
      %s74 = sphi 0, %s72
      %s75 = sphi 0, %s74
      %s89 = sphi 0, %s75
      %s93 = sphi 0, %s93
      %s95 = sphi 0, %s93
      %s96 = sphi 0, %s95
      %s110 = sphi 0, %s96
      %s114 = sphi 0, %s114
      %s116 = sphi 0, %s114
      %s117 = sphi 0, %s116
      %s131 = sphi 0, %s117
      %s137 = sphi 0, %s139
      %s140 = sphi 0, %s137
      %s141 = sphi 0, %s140
      %s157 = sphi 0, %s141
    $region4: #{tpu_custom_call.1} parent=1 // loop_header_branch
      %20 = sbr.rel (%p18) target = $region8
    $region5: #{tpu_custom_call.1} parent=1 // loop_body
      %s22 = ssub.s32 %s17, 1
      %s23 = ssub.s32 %s17, 2
      %s24 = sadd.s32 %s17, 1
      %s25 = ssub.s32 %s17, %s24
      %p26 = scmp.eq.s32.totalorder %s25, 0
      %s28 = sadd.s32 %s27, 1
      %s29 = scalar_select %p26, %s27, %s28
      %p32 = pneg %p26
      %p33 = scmp.eq.s32.totalorder %s17, 1
      %p34 = por %p32, %p33
      %p35 = scmp.ne.s32.totalorder %s27, %s30
      %p36 = scmp.eq.s32.totalorder %s17, 0
      %p37 = por %p35, %p36
      %p38 = scmp.ne.s32.totalorder %s27, %s30
      %p39 = scmp.eq.s32.totalorder %s22, 1
      %p40 = por %p38, %p39
      %p41 = scmp.ne.s32.totalorder %s30, %s31
      %p42 = scmp.eq.s32.totalorder %s22, 0
      %p43 = por %p41, %p42
      %p44 = scmp.ne.s32.totalorder %s30, %s31
      %p45 = scmp.eq.s32.totalorder %s23, 1
      %p46 = por %p44, %p45
      %p48 = scmp.ne.s32.totalorder %s31, %s47
      %p49 = scmp.eq.s32.totalorder %s23, 0
      %p50 = por %p48, %p49
      %s52 = sadd.s32 %s51, 1
      %p55 = scmp.eq.s32.totalorder %s17, 1
      %p56 = scmp.ne.s32.totalorder %s51, %s53
      %p57 = scmp.eq.s32.totalorder %s17, 0
      %p58 = por %p56, %p57
      %p59 = scmp.ne.s32.totalorder %s51, %s53
      %p60 = scmp.eq.s32.totalorder %s22, 1
      %p61 = por %p59, %p60
      %p62 = scmp.ne.s32.totalorder %s53, %s54
      %p63 = scmp.eq.s32.totalorder %s22, 0
      %p64 = por %p62, %p63
      %p65 = scmp.ne.s32.totalorder %s53, %s54
      %p66 = scmp.eq.s32.totalorder %s23, 1
      %p67 = por %p65, %p66
      %p69 = scmp.ne.s32.totalorder %s54, %s68
      %p70 = scmp.eq.s32.totalorder %s23, 0
      %p71 = por %p69, %p70
      %s73 = sadd.s32 %s72, 1
      %p76 = scmp.eq.s32.totalorder %s17, 1
      %p77 = scmp.ne.s32.totalorder %s72, %s74
      %p78 = scmp.eq.s32.totalorder %s17, 0
      %p79 = por %p77, %p78
      %p80 = scmp.ne.s32.totalorder %s72, %s74
      %p81 = scmp.eq.s32.totalorder %s22, 1
      %p82 = por %p80, %p81
      %p83 = scmp.ne.s32.totalorder %s74, %s75
      %p84 = scmp.eq.s32.totalorder %s22, 0
      %p85 = por %p83, %p84
      %p86 = scmp.ne.s32.totalorder %s74, %s75
      %p87 = scmp.eq.s32.totalorder %s23, 1
      %p88 = por %p86, %p87
      %p90 = scmp.ne.s32.totalorder %s75, %s89
      %p91 = scmp.eq.s32.totalorder %s23, 0
      %p92 = por %p90, %p91
      %s94 = sadd.s32 %s93, 1
      %p97 = scmp.eq.s32.totalorder %s17, 1
      %p98 = scmp.ne.s32.totalorder %s93, %s95
      %p99 = scmp.eq.s32.totalorder %s17, 0
      %p100 = por %p98, %p99
      %p101 = scmp.ne.s32.totalorder %s93, %s95
      %p102 = scmp.eq.s32.totalorder %s22, 1
      %p103 = por %p101, %p102
      %p104 = scmp.ne.s32.totalorder %s95, %s96
      %p105 = scmp.eq.s32.totalorder %s22, 0
      %p106 = por %p104, %p105
      %p107 = scmp.ne.s32.totalorder %s95, %s96
      %p108 = scmp.eq.s32.totalorder %s23, 1
      %p109 = por %p107, %p108
      %p111 = scmp.ne.s32.totalorder %s96, %s110
      %p112 = scmp.eq.s32.totalorder %s23, 0
      %p113 = por %p111, %p112
      %s115 = sadd.s32 %s114, 1
      %p118 = scmp.eq.s32.totalorder %s17, 1
      %p119 = scmp.ne.s32.totalorder %s114, %s116
      %p120 = scmp.eq.s32.totalorder %s17, 0
      %p121 = por %p119, %p120
      %p122 = scmp.ne.s32.totalorder %s114, %s116
      %p123 = scmp.eq.s32.totalorder %s22, 1
      %p124 = por %p122, %p123
      %p125 = scmp.ne.s32.totalorder %s116, %s117
      %p126 = scmp.eq.s32.totalorder %s22, 0
      %p127 = por %p125, %p126
      %p128 = scmp.ne.s32.totalorder %s116, %s117
      %p129 = scmp.eq.s32.totalorder %s23, 1
      %p130 = por %p128, %p129
      %p132 = scmp.ne.s32.totalorder %s117, %s131
      %p133 = scmp.eq.s32.totalorder %s23, 0
      %p134 = por %p132, %p133
      %s135 = ssub.s32 %s17, %s24
      %p136 = scmp.eq.s32.totalorder %s135, 0
      %s138 = sadd.s32 %s137, 1
      %s139 = scalar_select %p136, %s137, %s138
      %p142 = pneg %p136
      %p143 = scmp.eq.s32.totalorder %s17, 1
      %p144 = por %p142, %p143
      %p145 = scmp.ne.s32.totalorder %s137, %s140
      %p146 = scmp.eq.s32.totalorder %s17, 0
      %p147 = por %p145, %p146
      %p148 = scmp.ne.s32.totalorder %s137, %s140
      %p149 = scmp.eq.s32.totalorder %s22, 1
      %p150 = por %p148, %p149
      %p151 = scmp.ne.s32.totalorder %s140, %s141
      %p152 = scmp.eq.s32.totalorder %s22, 0
      %p153 = por %p151, %p152
      %p154 = scmp.ne.s32.totalorder %s140, %s141
      %p155 = scmp.eq.s32.totalorder %s23, 1
      %p156 = por %p154, %p155
      %p158 = scmp.ne.s32.totalorder %s141, %s157
      %p159 = scmp.eq.s32.totalorder %s23, 0
      %p160 = por %p158, %p159
      %p161 = scmp.le.s32.totalorder 1, %s17
      %p162 = scmp.lt.s32.totalorder %s17, 3
      %p163 = pnand %p161, %p162
      %p164 = pneg %p163
      // Predicated region
      $region9: #{tpu_custom_call.1} parent=5 // pred_check
        _
      $region10: #{tpu_custom_call.1} parent=5 // pred_check_branch
        %166 = sbr.rel (%p163) target = $region12
      $region11: #{tpu_custom_call.1} parent=5 // pred_region
        %s167 = ssub.s32 %s17, 1
        // Predicated region
        $region13: #{tpu_custom_call.1} parent=11 // pred_check
          %p168 = pneg %p64
        $region14: #{tpu_custom_call.1} parent=11 // pred_check_branch
          %170 = sbr.rel (%p168) target = $region16
        $region15: #{tpu_custom_call.1} parent=11 // pred_region
          _
        $region16: #{tpu_custom_call.1} parent=11 // pred_fallthru
          _
        // Predicated region
        $region17: #{tpu_custom_call.1} parent=11 // pred_check
          %p171 = pneg %p85
        $region18: #{tpu_custom_call.1} parent=11 // pred_check_branch
          %173 = sbr.rel (%p171) target = $region20
        $region19: #{tpu_custom_call.1} parent=11 // pred_region
          _
        $region20: #{tpu_custom_call.1} parent=11 // pred_fallthru
          _
        // Predicated region
        $region21: #{tpu_custom_call.1} parent=11 // pred_check
          %p174 = pneg %p106
        $region22: #{tpu_custom_call.1} parent=11 // pred_check_branch
          %176 = sbr.rel (%p174) target = $region24
        $region23: #{tpu_custom_call.1} parent=11 // pred_region
          _
        $region24: #{tpu_custom_call.1} parent=11 // pred_fallthru
          _
        // Predicated region
        $region25: #{tpu_custom_call.1} parent=11 // pred_check
          %p177 = pneg %p127
        $region26: #{tpu_custom_call.1} parent=11 // pred_check_branch
          %179 = sbr.rel (%p177) target = $region28
        $region27: #{tpu_custom_call.1} parent=11 // pred_region
          _
        $region28: #{tpu_custom_call.1} parent=11 // pred_fallthru
          _
      $region12: #{tpu_custom_call.1} parent=5 // pred_fallthru
        _
      %p180 = scmp.lt.s32.totalorder %s17, 2
      // Predicated region
      $region29: #{tpu_custom_call.1} parent=5 // pred_check
        %p181 = pneg %p180
      $region30: #{tpu_custom_call.1} parent=5 // pred_check_branch
        %183 = sbr.rel (%p181) target = $region32
      $region31: #{tpu_custom_call.1} parent=5 // pred_region
        // Predicated region
        $region33: #{tpu_custom_call.1} parent=31 // pred_check
          %p184 = pneg %p37
        $region34: #{tpu_custom_call.1} parent=31 // pred_check_branch
          %186 = sbr.rel (%p184) target = $region36
        $region35: #{tpu_custom_call.1} parent=31 // pred_region
          %s187 = sand.u32 %s27, 1
          %s188 = scalar_lea.sflag [#allocation3], %s187
          %s189 = sand.u32 %s27, 1
          %s190 = smul.addr %s189, 64
          %s191 = scalar_lea.vmem [#allocation2], %s190
          %s193 = ssub.s32 1024, 1024
          %194 = vsyncadd %s188, %s193
          %s195 = smul.addr %s17, 8
          %s196 = smul.addr %s195, 128
          %s197 = scalar_lea.hbm %s0, %s196
          %s198 = sshll.u32 %s191, 4
          %s199 = int_to_ptr.vmem [resolvable:$true] %s198
          %204 = dma.hbm_to_vmem [thread:$0]  %s197, 1024, %s199, %s188, 256, 256, 16
        $region36: #{tpu_custom_call.1} parent=31 // pred_fallthru
          _
      $region32: #{tpu_custom_call.1} parent=5 // pred_fallthru
        _
      %p205 = scmp.le.s32.totalorder 1, %s17
      %p206 = scmp.lt.s32.totalorder %s17, 3
      %p207 = pnand %p205, %p206
      %p208 = pneg %p207
      // Predicated region
      $region37: #{tpu_custom_call.1} parent=5 // pred_check
        _
      $region38: #{tpu_custom_call.1} parent=5 // pred_check_branch
        %210 = sbr.rel (%p207) target = $region40
      $region39: #{tpu_custom_call.1} parent=5 // pred_region
        %s211 = ssub.s32 %s17, 1
        %s212 = sand.u32 %s30, 1
        %s213 = scalar_lea.sflag [#allocation3], %s212
        %s214 = sand.u32 %s30, 1
        %s215 = smul.addr %s214, 64
        %s216 = scalar_lea.vmem [#allocation2], %s215
        // Predicated region
        $region41: #{tpu_custom_call.1} parent=39 // pred_check
          %p217 = pneg %p43
        $region42: #{tpu_custom_call.1} parent=39 // pred_check_branch
          %219 = sbr.rel (%p217) target = $region44
        $region43: #{tpu_custom_call.1} parent=39 // pred_region
          %220 = dma.done %s213, 1024
        $region44: #{tpu_custom_call.1} parent=39 // pred_fallthru
          _
        %s221 = sand.u32 %s30, 1
        %s222 = scalar_lea.sflag [#allocation3], %s221
        %s223 = sand.u32 %s30, 1
        %s224 = smul.addr %s223, 64
        %s225 = scalar_lea.vmem [#allocation2], %s224
        %p226 = pneg %p43
        %p227 = pneg %p40
        %p228 = pneg %p64
        %p229 = pneg %p61
        %p230 = pneg %p85
        %p231 = pneg %p82
        %p232 = pneg %p106
        %p233 = pneg %p103
        %p234 = pneg %p127
        %p235 = pneg %p124
        %p236 = pneg %p153
        %p237 = pneg %p150
        %s238 = sand.u32 %s140, 1
        %s239 = scalar_lea.sflag [#allocation4], %s238
        %s240 = sand.u32 %s140, 1
        %s241 = smul.addr %s240, 64
        %s242 = scalar_lea.vmem [#allocation5], %s241
        %v243 = vld [vmem:[%s216] sm:$0xff]
        %v244 = vld [vmem:[%s216 + $0x8] sm:$0xff]
        %v245 = vld [vmem:[%s216 + $0x10] sm:$0xff]
        %v246 = vld [vmem:[%s216 + $0x18] sm:$0xff]
        %v247 = vld [vmem:[%s216 + $0x20] sm:$0xff]
        %v248 = vld [vmem:[%s216 + $0x28] sm:$0xff]
        %v249 = vld [vmem:[%s216 + $0x30] sm:$0xff]
        %v250 = vld [vmem:[%s216 + $0x38] sm:$0xff]
        %v251 = vadd.f32 %v243, %v244
        %252 = vadd.xlane.f32.xlu0 %v251
        %v253 = vpop.xlane.xlu0 %252
        %v254 = vadd.f32 %v245, %v246
        %255 = vadd.xlane.f32.xlu0 %v254
        %v256 = vpop.xlane.xlu0 %255
        %v257 = vadd.f32 %v247, %v248
        %258 = vadd.xlane.f32.xlu0 %v257
        %v259 = vpop.xlane.xlu0 %258
        %v260 = vadd.f32 %v249, %v250
        %261 = vadd.xlane.f32.xlu0 %v260
        %v262 = vpop.xlane.xlu0 %261
        %v263 = vmul.f32 %v253, 0.00390625
        %v264 = vmul.f32 %v256, 0.00390625
        %v265 = vmul.f32 %v259, 0.00390625
        %v266 = vmul.f32 %v262, 0.00390625
        %v267 = vmax.f32 %v243, %v244
        %268 = vmax.xlane.f32.xlu0 %v267
        %v269 = vpop.xlane.xlu0 %268
        %v270 = vmax.f32 %v245, %v246
        %271 = vmax.xlane.f32.xlu0 %v270
        %v272 = vpop.xlane.xlu0 %271
        %v273 = vmax.f32 %v247, %v248
        %274 = vmax.xlane.f32.xlu0 %v273
        %v275 = vpop.xlane.xlu0 %274
        %v276 = vmax.f32 %v249, %v250
        %277 = vmax.xlane.f32.xlu0 %v276
        %v278 = vpop.xlane.xlu0 %277
        %v279 = vld [vmem:[%s1] sm:$0xff]
        %v280 = vld [vmem:[%s1 + $0x8] sm:$0xff]
        %v281 = vld [vmem:[%s1 + $0x10] sm:$0xff]
        %v282 = vld [vmem:[%s1 + $0x18] sm:$0xff]
        %v283 = vld [vmem:[%s2] sm:$0x1]
        %v288 = vlaneseq
        %v289 = vand.u32 %v288, 127
        %v290 = vlaneseq
        %v291 = vshrl.u32 %v290, 7
        %v292 = vsub.s32 %v289, %v291
        %v293 = vrot.slane %v263, %v292
        %v294 = vadd.s32 %v289, 4294967288
        %v295 = vlaneseq
        %v296 = vshrl.u32 %v295, 7
        %v297 = vsub.s32 %v294, %v296
        %v298 = vrot.slane %v264, %v297
        %vm299 = vcmask 130112
        %v300 = vsel %vm299, %v298, %v293
        %v301 = vadd.s32 %v289, 4294967280
        %v302 = vlaneseq
        %v303 = vshrl.u32 %v302, 7
        %v304 = vsub.s32 %v301, %v303
        %v305 = vrot.slane %v265, %v304
        %vm306 = vcmask 195712
        %v307 = vsel %vm306, %v305, %v300
        %v308 = vadd.s32 %v289, 4294967272
        %v309 = vlaneseq
        %v310 = vshrl.u32 %v309, 7
        %v311 = vsub.s32 %v308, %v310
        %v312 = vrot.slane %v266, %v311
        %vm313 = vcmask 261312
        %v314 = vsel %vm313, %v312, %v307
        %vm315 = vcmask 261120
        %v316 = vsel %vm315, %v314, 0
        %318 = vmatprep.subr.mxu0 0.0
        %319 = vmatpush1.msra.mxu0 %v279
        %320 = vmatprep.subr.mxu0 0.0
        %321 = vmatpush1.msra.mxu0 %v280
        %322 = vmatprep.subr.mxu0 0.0
        %323 = vmatpush1.msra.mxu0 %v281
        %324 = vmatprep.subr.mxu0 0.0
        %325 = vmatpush1.msra.mxu0 %v282
        %326 = vmatprep.subr.mxu0 0.0
        %327 = vmatpush1.msra.mxu0 0.0
        %328 = vmatprep.subr.mxu0 0.0
        %329 = vmatpush1.msra.mxu0 0.0
        %330 = vmatprep.subr.mxu0 0.0
        %331 = vmatpush1.msra.mxu0 0.0
        %332 = vmatprep.subr.mxu0 0.0
        %333 = vmatpush1.msra.mxu0 0.0
        %334 = vmatprep.subr.mxu0 0.0
        %335 = vmatpush1.msra.mxu0 0.0
        %336 = vmatprep.subr.mxu0 0.0
        %337 = vmatpush1.msra.mxu0 0.0
        %338 = vmatprep.subr.mxu0 0.0
        %339 = vmatpush1.msra.mxu0 0.0
        %340 = vmatprep.subr.mxu0 0.0
        %341 = vmatpush1.msra.mxu0 0.0
        %342 = vmatprep.subr.mxu0 0.0
        %343 = vmatpush1.msra.mxu0 0.0
        %344 = vmatprep.subr.mxu0 0.0
        %345 = vmatpush1.msra.mxu0 0.0
        %346 = vmatprep.subr.mxu0 0.0
        %347 = vmatpush1.msra.mxu0 0.0
        %348 = vmatprep.subr.mxu0 0.0
        %349 = vmatpush1.msra.mxu0 0.0
        %350 = vmatprep.subr.mxu0 0.0
        %351 = vmatpush1.msra.mxu0 0.0
        %352 = vmatprep.subr.mxu0 0.0
        %353 = vmatpush1.msra.mxu0 0.0
        %354 = vmatprep.subr.mxu0 0.0
        %355 = vmatpush1.msra.mxu0 0.0
        %356 = vmatprep.subr.mxu0 0.0
        %357 = vmatpush1.msra.mxu0 0.0
        %358 = vmatprep.subr.mxu0 0.0
        %359 = vmatpush1.msra.mxu0 0.0
        %360 = vmatprep.subr.mxu0 0.0
        %361 = vmatpush1.msra.mxu0 0.0
        %362 = vmatprep.subr.mxu0 0.0
        %363 = vmatpush1.msra.mxu0 0.0
        %364 = vmatprep.subr.mxu0 0.0
        %365 = vmatpush1.msra.mxu0 0.0
        %366 = vmatprep.subr.mxu0 0.0
        %367 = vmatpush1.msra.mxu0 0.0
        %368 = vmatprep.subr.mxu0 0.0
        %369 = vmatpush1.msra.mxu0 0.0
        %370 = vmatprep.subr.mxu0 0.0
        %371 = vmatpush1.msra.mxu0 0.0
        %372 = vmatprep.subr.mxu0 0.0
        %373 = vmatpush1.msra.mxu0 0.0
        %374 = vmatprep.subr.mxu0 0.0
        %375 = vmatpush1.msra.mxu0 0.0
        %376 = vmatprep.subr.mxu0 0.0
        %377 = vmatpush1.msra.mxu0 0.0
        %378 = vmatprep.subr.mxu0 0.0
        %379 = vmatpush1.msra.mxu0 0.0
        %380 = vmatprep.subr.mxu0 0.0
        %381 = vmatpush1.msra.mxu0 0.0
        %382 = vmatprep.mubr.f32.mxu0 0.0
        %383 = vmatmul.mubr.f32.gmra.mrb[0].mxu0 %v316
        %v384 = vpop.f32.mrb[0].mxu0
        %v385 = vadd.f32 %v283, %v384
        %v386 = vpop.f32.mrb[0].mxu0
        %387 = vdwg.mxu0
        %v388 = vmax.f32 %v385, 0.0
        %v389 = vld [vmem:[%s3] sm:$0x3]
        %v390 = vld [vmem:[%s4] sm:$0x1]
        %vm391 = vcmask 15360
        %v393 = vsel %vm391, %v388, 0
        %vm395 = vcmask 1041408
        %v397 = vsel %vm395, %v389, 0
        %399 = vmatprep.subr.mxu0 0.0
        %400 = vmatpush1.msra.mxu0 %v397
        %401 = vmatprep.subr.mxu0 0.0
        %402 = vmatpush1.msra.mxu0 0.0
        %403 = vmatprep.subr.mxu0 0.0
        %404 = vmatpush1.msra.mxu0 0.0
        %405 = vmatprep.subr.mxu0 0.0
        %406 = vmatpush1.msra.mxu0 0.0
        %407 = vmatprep.subr.mxu0 0.0
        %408 = vmatpush1.msra.mxu0 0.0
        %409 = vmatprep.subr.mxu0 0.0
        %410 = vmatpush1.msra.mxu0 0.0
        %411 = vmatprep.subr.mxu0 0.0
        %412 = vmatpush1.msra.mxu0 0.0
        %413 = vmatprep.subr.mxu0 0.0
        %414 = vmatpush1.msra.mxu0 0.0
        %415 = vmatprep.subr.mxu0 0.0
        %416 = vmatpush1.msra.mxu0 0.0
        %417 = vmatprep.subr.mxu0 0.0
        %418 = vmatpush1.msra.mxu0 0.0
        %419 = vmatprep.subr.mxu0 0.0
        %420 = vmatpush1.msra.mxu0 0.0
        %421 = vmatprep.subr.mxu0 0.0
        %422 = vmatpush1.msra.mxu0 0.0
        %423 = vmatprep.subr.mxu0 0.0
        %424 = vmatpush1.msra.mxu0 0.0
        %425 = vmatprep.subr.mxu0 0.0
        %426 = vmatpush1.msra.mxu0 0.0
        %427 = vmatprep.subr.mxu0 0.0
        %428 = vmatpush1.msra.mxu0 0.0
        %429 = vmatprep.subr.mxu0 0.0
        %430 = vmatpush1.msra.mxu0 0.0
        %431 = vmatprep.subr.mxu0 0.0
        %432 = vmatpush1.msra.mxu0 0.0
        %433 = vmatprep.subr.mxu0 0.0
        %434 = vmatpush1.msra.mxu0 0.0
        %435 = vmatprep.subr.mxu0 0.0
        %436 = vmatpush1.msra.mxu0 0.0
        %437 = vmatprep.subr.mxu0 0.0
        %438 = vmatpush1.msra.mxu0 0.0
        %439 = vmatprep.subr.mxu0 0.0
        %440 = vmatpush1.msra.mxu0 0.0
        %441 = vmatprep.subr.mxu0 0.0
        %442 = vmatpush1.msra.mxu0 0.0
        %443 = vmatprep.subr.mxu0 0.0
        %444 = vmatpush1.msra.mxu0 0.0
        %445 = vmatprep.subr.mxu0 0.0
        %446 = vmatpush1.msra.mxu0 0.0
        %447 = vmatprep.subr.mxu0 0.0
        %448 = vmatpush1.msra.mxu0 0.0
        %449 = vmatprep.subr.mxu0 0.0
        %450 = vmatpush1.msra.mxu0 0.0
        %451 = vmatprep.subr.mxu0 0.0
        %452 = vmatpush1.msra.mxu0 0.0
        %453 = vmatprep.subr.mxu0 0.0
        %454 = vmatpush1.msra.mxu0 0.0
        %455 = vmatprep.subr.mxu0 0.0
        %456 = vmatpush1.msra.mxu0 0.0
        %457 = vmatprep.subr.mxu0 0.0
        %458 = vmatpush1.msra.mxu0 0.0
        %459 = vmatprep.subr.mxu0 0.0
        %460 = vmatpush1.msra.mxu0 0.0
        %461 = vmatprep.subr.mxu0 0.0
        %462 = vmatpush1.msra.mxu0 0.0
        %463 = vmatprep.mubr.f32.mxu0 0.0
        %464 = vmatmul.mubr.f32.gmra.mrb[0].mxu0 %v393
        %v465 = vpop.f32.mrb[0].mxu0
        %v466 = vadd.f32 %v390, %v465
        %v467 = vpop.f32.mrb[0].mxu0
        %468 = vdwg.mxu0
        %v473 = vlaneseq
        %v474 = vshrl.u32 %v473, 7
        %v475 = vsub.s32 %v289, %v474
        %v476 = vrot.slane %v269, %v475
        %v477 = vlaneseq
        %v478 = vshrl.u32 %v477, 7
        %v479 = vsub.s32 %v294, %v478
        %v480 = vrot.slane %v272, %v479
        %v481 = vsel %vm299, %v480, %v476
        %v482 = vlaneseq
        %v483 = vshrl.u32 %v482, 7
        %v484 = vsub.s32 %v301, %v483
        %v485 = vrot.slane %v275, %v484
        %v486 = vsel %vm306, %v485, %v481
        %v487 = vlaneseq
        %v488 = vshrl.u32 %v487, 7
        %v489 = vsub.s32 %v308, %v488
        %v490 = vrot.slane %v278, %v489
        %v491 = vsel %vm313, %v490, %v486
        %v492 = vsel %vm315, %v491, 0
        %494 = vmatprep.subr.mxu0 0.0
        %495 = vmatpush1.msra.mxu0 %v279
        %496 = vmatprep.subr.mxu0 0.0
        %497 = vmatpush1.msra.mxu0 %v280
        %498 = vmatprep.subr.mxu0 0.0
        %499 = vmatpush1.msra.mxu0 %v281
        %500 = vmatprep.subr.mxu0 0.0
        %501 = vmatpush1.msra.mxu0 %v282
        %502 = vmatprep.subr.mxu0 0.0
        %503 = vmatpush1.msra.mxu0 0.0
        %504 = vmatprep.subr.mxu0 0.0
        %505 = vmatpush1.msra.mxu0 0.0
        %506 = vmatprep.subr.mxu0 0.0
        %507 = vmatpush1.msra.mxu0 0.0
        %508 = vmatprep.subr.mxu0 0.0
        %509 = vmatpush1.msra.mxu0 0.0
        %510 = vmatprep.subr.mxu0 0.0
        %511 = vmatpush1.msra.mxu0 0.0
        %512 = vmatprep.subr.mxu0 0.0
        %513 = vmatpush1.msra.mxu0 0.0
        %514 = vmatprep.subr.mxu0 0.0
        %515 = vmatpush1.msra.mxu0 0.0
        %516 = vmatprep.subr.mxu0 0.0
        %517 = vmatpush1.msra.mxu0 0.0
        %518 = vmatprep.subr.mxu0 0.0
        %519 = vmatpush1.msra.mxu0 0.0
        %520 = vmatprep.subr.mxu0 0.0
        %521 = vmatpush1.msra.mxu0 0.0
        %522 = vmatprep.subr.mxu0 0.0
        %523 = vmatpush1.msra.mxu0 0.0
        %524 = vmatprep.subr.mxu0 0.0
        %525 = vmatpush1.msra.mxu0 0.0
        %526 = vmatprep.subr.mxu0 0.0
        %527 = vmatpush1.msra.mxu0 0.0
        %528 = vmatprep.subr.mxu0 0.0
        %529 = vmatpush1.msra.mxu0 0.0
        %530 = vmatprep.subr.mxu0 0.0
        %531 = vmatpush1.msra.mxu0 0.0
        %532 = vmatprep.subr.mxu0 0.0
        %533 = vmatpush1.msra.mxu0 0.0
        %534 = vmatprep.subr.mxu0 0.0
        %535 = vmatpush1.msra.mxu0 0.0
        %536 = vmatprep.subr.mxu0 0.0
        %537 = vmatpush1.msra.mxu0 0.0
        %538 = vmatprep.subr.mxu0 0.0
        %539 = vmatpush1.msra.mxu0 0.0
        %540 = vmatprep.subr.mxu0 0.0
        %541 = vmatpush1.msra.mxu0 0.0
        %542 = vmatprep.subr.mxu0 0.0
        %543 = vmatpush1.msra.mxu0 0.0
        %544 = vmatprep.subr.mxu0 0.0
        %545 = vmatpush1.msra.mxu0 0.0
        %546 = vmatprep.subr.mxu0 0.0
        %547 = vmatpush1.msra.mxu0 0.0
        %548 = vmatprep.subr.mxu0 0.0
        %549 = vmatpush1.msra.mxu0 0.0
        %550 = vmatprep.subr.mxu0 0.0
        %551 = vmatpush1.msra.mxu0 0.0
        %552 = vmatprep.subr.mxu0 0.0
        %553 = vmatpush1.msra.mxu0 0.0
        %554 = vmatprep.subr.mxu0 0.0
        %555 = vmatpush1.msra.mxu0 0.0
        %556 = vmatprep.subr.mxu0 0.0
        %557 = vmatpush1.msra.mxu0 0.0
        %558 = vmatprep.mubr.f32.mxu0 0.0
        %559 = vmatmul.mubr.f32.gmra.mrb[0].mxu0 %v492
        %v560 = vpop.f32.mrb[0].mxu0
        %v561 = vadd.f32 %v283, %v560
        %v562 = vpop.f32.mrb[0].mxu0
        %563 = vdwg.mxu0
        %v564 = vmax.f32 %v561, 0.0
        %v566 = vsel %vm391, %v564, 0
        %568 = vmatprep.subr.mxu0 0.0
        %569 = vmatpush1.msra.mxu0 %v397
        %570 = vmatprep.subr.mxu0 0.0
        %571 = vmatpush1.msra.mxu0 0.0
        %572 = vmatprep.subr.mxu0 0.0
        %573 = vmatpush1.msra.mxu0 0.0
        %574 = vmatprep.subr.mxu0 0.0
        %575 = vmatpush1.msra.mxu0 0.0
        %576 = vmatprep.subr.mxu0 0.0
        %577 = vmatpush1.msra.mxu0 0.0
        %578 = vmatprep.subr.mxu0 0.0
        %579 = vmatpush1.msra.mxu0 0.0
        %580 = vmatprep.subr.mxu0 0.0
        %581 = vmatpush1.msra.mxu0 0.0
        %582 = vmatprep.subr.mxu0 0.0
        %583 = vmatpush1.msra.mxu0 0.0
        %584 = vmatprep.subr.mxu0 0.0
        %585 = vmatpush1.msra.mxu0 0.0
        %586 = vmatprep.subr.mxu0 0.0
        %587 = vmatpush1.msra.mxu0 0.0
        %588 = vmatprep.subr.mxu0 0.0
        %589 = vmatpush1.msra.mxu0 0.0
        %590 = vmatprep.subr.mxu0 0.0
        %591 = vmatpush1.msra.mxu0 0.0
        %592 = vmatprep.subr.mxu0 0.0
        %593 = vmatpush1.msra.mxu0 0.0
        %594 = vmatprep.subr.mxu0 0.0
        %595 = vmatpush1.msra.mxu0 0.0
        %596 = vmatprep.subr.mxu0 0.0
        %597 = vmatpush1.msra.mxu0 0.0
        %598 = vmatprep.subr.mxu0 0.0
        %599 = vmatpush1.msra.mxu0 0.0
        %600 = vmatprep.subr.mxu0 0.0
        %601 = vmatpush1.msra.mxu0 0.0
        %602 = vmatprep.subr.mxu0 0.0
        %603 = vmatpush1.msra.mxu0 0.0
        %604 = vmatprep.subr.mxu0 0.0
        %605 = vmatpush1.msra.mxu0 0.0
        %606 = vmatprep.subr.mxu0 0.0
        %607 = vmatpush1.msra.mxu0 0.0
        %608 = vmatprep.subr.mxu0 0.0
        %609 = vmatpush1.msra.mxu0 0.0
        %610 = vmatprep.subr.mxu0 0.0
        %611 = vmatpush1.msra.mxu0 0.0
        %612 = vmatprep.subr.mxu0 0.0
        %613 = vmatpush1.msra.mxu0 0.0
        %614 = vmatprep.subr.mxu0 0.0
        %615 = vmatpush1.msra.mxu0 0.0
        %616 = vmatprep.subr.mxu0 0.0
        %617 = vmatpush1.msra.mxu0 0.0
        %618 = vmatprep.subr.mxu0 0.0
        %619 = vmatpush1.msra.mxu0 0.0
        %620 = vmatprep.subr.mxu0 0.0
        %621 = vmatpush1.msra.mxu0 0.0
        %622 = vmatprep.subr.mxu0 0.0
        %623 = vmatpush1.msra.mxu0 0.0
        %624 = vmatprep.subr.mxu0 0.0
        %625 = vmatpush1.msra.mxu0 0.0
        %626 = vmatprep.subr.mxu0 0.0
        %627 = vmatpush1.msra.mxu0 0.0
        %628 = vmatprep.subr.mxu0 0.0
        %629 = vmatpush1.msra.mxu0 0.0
        %630 = vmatprep.subr.mxu0 0.0
        %631 = vmatpush1.msra.mxu0 0.0
        %632 = vmatprep.mubr.f32.mxu0 0.0
        %633 = vmatmul.mubr.f32.gmra.mrb[0].mxu0 %v566
        %v634 = vpop.f32.mrb[0].mxu0
        %v635 = vadd.f32 %v390, %v634
        %v636 = vpop.f32.mrb[0].mxu0
        %637 = vdwg.mxu0
        %v638 = vadd.f32 %v466, %v635
        %v639 = vxor.u32 %v638, 2147483648
        %v640 = vmul.f32 %v639, 1.442695
        %v641 = vpow.pop %v640
        %v642 = vadd.f32 %v641, 1.0
        %v643 = vrcp.pop %v642
        %v644 = vmul.f32 1.0, %v643
        %v645 = vlaneseq
        %v646 = vshrl.u32 %v645, 7
        %v647 = vsub.s32 0, %v646
        %v648 = vrot.slane %v644, %v647
        %650 = vbcast.lane.b32.xlu0 %v648, 256
        %v651 = vpop.permute.xlu0 %650
        %s653 = sor.u32 256, 8
        %654 = vbcast.lane.b32.xlu0 %v648, %s653
        %v655 = vpop.permute.xlu0 %654
        %s657 = sor.u32 256, 16
        %658 = vbcast.lane.b32.xlu0 %v648, %s657
        %v659 = vpop.permute.xlu0 %658
        %s661 = sor.u32 256, 24
        %662 = vbcast.lane.b32.xlu0 %v648, %s661
        %v663 = vpop.permute.xlu0 %662
        %v664 = vmul.f32 %v243, %v651
        %v665 = vmul.f32 %v244, %v651
        %v666 = vmul.f32 %v245, %v655
        %v667 = vmul.f32 %v246, %v655
        %v668 = vmul.f32 %v247, %v659
        %v669 = vmul.f32 %v248, %v659
        %v670 = vmul.f32 %v249, %v663
        %v671 = vmul.f32 %v250, %v663
        %672 = vst [vmem:[%s242] sm:$0xff] %v664
        %673 = vst [vmem:[%s242 + $0x8] sm:$0xff] %v665
        %674 = vst [vmem:[%s242 + $0x10] sm:$0xff] %v666
        %675 = vst [vmem:[%s242 + $0x18] sm:$0xff] %v667
        %676 = vst [vmem:[%s242 + $0x20] sm:$0xff] %v668
        %677 = vst [vmem:[%s242 + $0x28] sm:$0xff] %v669
        %678 = vst [vmem:[%s242 + $0x30] sm:$0xff] %v670
        %679 = vst [vmem:[%s242 + $0x38] sm:$0xff] %v671
        %s680 = sand.u32 %s140, 1
        %s681 = scalar_lea.sflag [#allocation4], %s680
        %s682 = sand.u32 %s140, 1
        %s683 = smul.addr %s682, 64
        %s684 = scalar_lea.vmem [#allocation5], %s683
        // Predicated region
        $region45: #{tpu_custom_call.1} parent=39 // pred_check
          %p685 = pneg %p150
        $region46: #{tpu_custom_call.1} parent=39 // pred_check_branch
          %687 = sbr.rel (%p685) target = $region48
        $region47: #{tpu_custom_call.1} parent=39 // pred_region
          %s689 = ssub.s32 1024, 1024
          %690 = vsyncadd %s681, %s689
          %s691 = smul.addr %s22, 8
          %s692 = smul.addr %s691, 128
          %s693 = scalar_lea.hbm %s5, %s692
          %s694 = sshll.u32 %s684, 4
          %s695 = int_to_ptr.vmem [resolvable:$true] %s694
          %700 = dma.vmem_to_hbm [thread:$0]  %s695, 1024, %s693, %s681, 256, 256, 16
        $region48: #{tpu_custom_call.1} parent=39 // pred_fallthru
          _
      $region40: #{tpu_custom_call.1} parent=5 // pred_fallthru
        _
      %p701 = scmp.le.s32.totalorder 2, %s17
      // Predicated region
      $region49: #{tpu_custom_call.1} parent=5 // pred_check
        %p702 = pneg %p701
      $region50: #{tpu_custom_call.1} parent=5 // pred_check_branch
        %704 = sbr.rel (%p702) target = $region52
      $region51: #{tpu_custom_call.1} parent=5 // pred_region
        %s705 = ssub.s32 %s17, 2
        // Predicated region
        $region53: #{tpu_custom_call.1} parent=51 // pred_check
          %p706 = pneg %p156
        $region54: #{tpu_custom_call.1} parent=51 // pred_check_branch
          %708 = sbr.rel (%p706) target = $region56
        $region55: #{tpu_custom_call.1} parent=51 // pred_region
          %s709 = sand.u32 %s141, 1
          %s710 = scalar_lea.sflag [#allocation4], %s709
          %s711 = sand.u32 %s141, 1
          %s712 = smul.addr %s711, 64
          %s713 = scalar_lea.vmem [#allocation5], %s712
          %714 = dma.done %s710, 1024
        $region56: #{tpu_custom_call.1} parent=51 // pred_fallthru
          _
      $region52: #{tpu_custom_call.1} parent=5 // pred_fallthru
        _
    $region6: #{tpu_custom_call.1} parent=1 // loop_footer
      %s21 = sadd.s32 1, %s17
    $region7: #{tpu_custom_call.1} parent=1 // loop_footer_branch
      %16 = sbr.rel target = $region3
    $region8: #{tpu_custom_call.1} parent=1 // loop_exit
      _
    %715 = vsyncpa [#allocation3], 1
    %s716 = scalar_lea.sflag [#allocation3], 1
    %717 = vsyncpa %s716, 1
    %718 = vsyncpa [#allocation4], 1
    %s719 = scalar_lea.sflag [#allocation4], 1
    %720 = vsyncpa %s719, 1

</llo_original>
